<compile_context>
chip_gen: v7x
topology: tpu7x:2x2x1
jax: 0.10.0
libtpu: 0.0.40
codegen_flags: <defaults>
</compile_context>

<pallas_src>
import jax
import jax.numpy as jnp
from jax.experimental import pallas as pl
from jax.experimental.pallas import tpu as pltpu


# ----------------------------------------------------------------------------
# Parameter-only CGSP matrix (hoisted out of the kernel; mirrors PyTorch code)
# ----------------------------------------------------------------------------
def linear_transform(ref_coef, trans_amp, trans_coef):
    # NOTE: shift_weight divides by (trans**2).sum(0); a zero column would give
    # inf/nan exactly as in the PyTorch reference -- left unchanged on purpose.
    trans_amp = trans_amp.reshape(-1, 1)
    normed = trans_coef / jnp.linalg.norm(trans_coef, axis=1, keepdims=True) * trans_amp
    trans = jnp.concatenate([ref_coef, normed], axis=-1)
    shift = -trans.sum(0)
    shift = shift.at[0].add(1.0)
    shift_weight = trans ** 2 / (trans ** 2).sum(0)
    return trans + shift * shift_weight


# ----------------------------------------------------------------------------
# Kernel: one lane-dense batch tile of  psi_p = M @ cat([ref_p, sita_p], 0)
# for every part p (real / imag), all in a single pallas_call.
# ----------------------------------------------------------------------------
def _make_spectral_kernel(nparts):
    def kernel(*refs):
        m_ref = refs[0]
        in_refs = refs[1:1 + 2 * nparts]     # ref_0, sita_0, ref_1, sita_1, ...
        out_refs = refs[1 + 2 * nparts:]     # out_0, out_1, ...

        M = m_ref[...].astype(jnp.float32)   # (nbands, 1+groups) -- tiny, resident

        for p in range(nparts):              # static unroll over parts
            ref_ref = in_refs[2 * p]         # (1, tb)
            sita_ref = in_refs[2 * p + 1]    # (groups, tb)
            groups = sita_ref.shape[0]

            # K = 1+groups is tiny (e.g. 4): unrolled VPU broadcast-FMAs.
            # Accumulator is kept (nbands, tb) wide so every vector op fills
            # `nbands` sublanes of each vreg; f32 compute keeps v5e correct.
            acc = M[:, 0:1] * ref_ref[...].astype(jnp.float32)
            for g in range(groups):          # static, unrolled
                acc = acc + M[:, g + 1:g + 2] * sita_ref[g:g + 1, :].astype(jnp.float32)

            out_refs[p][...] = acc.astype(out_refs[p].dtype)

    return kernel


# ----------------------------------------------------------------------------
# Tiling / VMEM budgeting helpers
# ----------------------------------------------------------------------------
def _round_up(x, m):
    return ((x + m - 1) // m) * m


def _round_down(x, m):
    return (x // m) * m


def _padded_block_bytes_per_lane(rows, dtype):
    """VMEM bytes per lane for a (rows, tb) block, padded to a full sublane tile."""
    itemsize = jnp.dtype(dtype).itemsize
    pack = max(1, 4 // itemsize)          # sub-32-bit dtypes pack along sublanes
    sub_tile = 8 * pack                   # sublane tile height for this dtype
    return _round_up(max(int(rows), 1), sub_tile) * itemsize


def _vmem_limit_bytes():
    """Per-generation scoped-VMEM request (explicit, per perf review)."""
    cap = 64 << 20                        # safe fallback = smallest physical (v7x)
    try:
        cap = int(pltpu.get_tpu_info().vmem_capacity_bytes)
    except Exception:
        pass
    cap = max(cap, 32 << 20)
    # Leave headroom for compiler-internal scratch; never request > 96 MiB.
    return int(min(cap * 3 // 4, 96 << 20))


# ----------------------------------------------------------------------------
# Wrapper: Pallas equivalent of spectral_base.faithful_transform
# ----------------------------------------------------------------------------
def faithful_transform_pallas(ref_coef, trans_amp, trans_coef,
                              ref_list, sita_list, *,
                              block_batch=None, out_dtype=None):
    """ref_list / sita_list: list/tuple of (1, batch) / (groups, batch) arrays
    (e.g. [real, imag]) or single arrays.  Returns a matching list (or array)
    of (nbands, batch) psi values."""
    is_list = isinstance(sita_list, (list, tuple))
    if not is_list:
        sita_list, ref_list = [sita_list], [ref_list]
    else:
        sita_list, ref_list = list(sita_list), list(ref_list)
    if len(sita_list) != len(ref_list):
        raise ValueError('lists size not equivalent')
    nparts = len(sita_list)

    # Hoisted, parameter-only matrix build (tiny: nbands x (1+groups)).
    M = linear_transform(ref_coef, trans_amp, trans_coef).astype(jnp.float32)
    nbands = M.shape[0]
    groups, batch = sita_list[0].shape

    # Pin a single I/O dtype (bf16 I/O halves HBM bytes; compute stays f32).
    io_dtype = jnp.result_type(*([a.dtype for a in ref_list] +
                                 [a.dtype for a in sita_list]))
    ref_list = [r.astype(io_dtype) for r in ref_list]
    sita_list = [s.astype(io_dtype) for s in sita_list]
    if out_dtype is None:
        out_dtype = io_dtype

    # ---- tile sizing against the real VMEM footprint --------------------
    vmem_limit = _vmem_limit_bytes()
    # Double-buffered Pallas blocks (ref, sita, out per part, each padded to a
    # full sublane tile) + f32 in-kernel temporaries (accumulator, upcasts).
    per_lane = 2 * nparts * (_padded_block_bytes_per_lane(1, io_dtype)
                             + _padded_block_bytes_per_lane(groups, io_dtype)
                             + _padded_block_bytes_per_lane(nbands, out_dtype))
    per_lane += nparts * 3 * _padded_block_bytes_per_lane(nbands, jnp.float32)

    if block_batch is None:
        tb = _round_down(int(vmem_limit * 0.7) // per_lane, 128)
        tb = max(128, min(tb, 262144))
    else:
        tb = max(128, _round_up(int(block_batch), 128))

    if batch > 256:
        # Ensure >= 2 tiles so both v7x TensorCores get work.
        tb = min(tb, _round_up(pl.cdiv(batch, 2), 128))
        grid = (pl.cdiv(batch, tb),)       # ragged last tile masked by Pallas
        lane_block = tb
    else:
        grid = (1,)
        lane_block = batch                 # full-extent block for tiny batches

    # ---- specs: one pallas_call, separate inputs/outputs per part --------
    in_specs = [pl.BlockSpec((nbands, 1 + groups), lambda i: (0, 0))]  # M resident
    out_specs = []
    out_shapes = []
    operands = [M]
    for p in range(nparts):
        in_specs.append(pl.BlockSpec((1, lane_block), lambda i: (0, i)))       # ref_p
        in_specs.append(pl.BlockSpec((groups, lane_block), lambda i: (0, i)))  # sita_p
        operands += [ref_list[p], sita_list[p]]
        out_specs.append(pl.BlockSpec((nbands, lane_block), lambda i: (0, i)))
        out_shapes.append(jax.ShapeDtypeStruct((nbands, batch), out_dtype))

    outs = pl.pallas_call(
        _make_spectral_kernel(nparts),
        out_shape=tuple(out_shapes),
        grid=grid,
        in_specs=in_specs,
        out_specs=tuple(out_specs),
        compiler_params=pltpu.CompilerParams(
            dimension_semantics=("parallel",),
            vmem_limit_bytes=int(vmem_limit)),
    )(*operands)

    psi_list = list(outs)
    return psi_list if is_list else psi_list[0]


# ----------------------------------------------------------------------------
# Pure-JAX reference (mirrors the PyTorch math) for correctness checking
# ----------------------------------------------------------------------------
def faithful_transform_ref(ref_coef, trans_amp, trans_coef, ref, sita):
    M = linear_transform(ref_coef, trans_amp, trans_coef)
    return jnp.matmul(M, jnp.concatenate([ref, sita], axis=0),
                      precision=jax.lax.Precision.HIGHEST)


if __name__ == "__main__":
    nbands, groups = 4, 3
    nspin = 10  # part of the module's config; not used by this compute path

    key = jax.random.PRNGKey(0)
    k1, k2, k3, k4, k5 = jax.random.split(key, 5)

    # Deterministic parameter init (same shapes / scheme as __init__):
    ref_coef = jnp.ones((nbands, 1), jnp.float32) / nbands
    trans_amp = jnp.ones((nbands,), jnp.float32) / (nbands ** 0.5) / 2.0
    trans_coef = jax.random.normal(k1, (nbands, groups), jnp.float32)

    # ---- small-batch path (single full-extent tile), real + imag parts ----
    batch = 8
    sita_r = jax.random.normal(k2, (groups, batch), jnp.float32)
    sita_i = jax.random.normal(k3, (groups, batch), jnp.float32)
    ref_r = jax.random.normal(k4, (1, batch), jnp.float32)
    ref_i = jax.random.normal(k5, (1, batch), jnp.float32)

    psi_r, psi_i = faithful_transform_pallas(
        ref_coef, trans_amp, trans_coef, [ref_r, ref_i], [sita_r, sita_i])
    jax.block_until_ready((psi_r, psi_i))

    exp_r = faithful_transform_ref(ref_coef, trans_amp, trans_coef, ref_r, sita_r)
    exp_i = faithful_transform_ref(ref_coef, trans_amp, trans_coef, ref_i, sita_i)
    assert psi_r.shape == (nbands, batch) and psi_i.shape == (nbands, batch)
    assert jnp.allclose(psi_r, exp_r, rtol=1e-4, atol=1e-4)
    assert jnp.allclose(psi_i, exp_i, rtol=1e-4, atol=1e-4)

    # ---- multi-tile + ragged-tail path (grid >= 2, both v7x TCs busy) -----
    batch2 = 4000
    kb = jax.random.split(key, 4)
    sita2_r = jax.random.normal(kb[0], (groups, batch2), jnp.float32)
    sita2_i = jax.random.normal(kb[1], (groups, batch2), jnp.float32)
    ref2_r = jax.random.normal(kb[2], (1, batch2), jnp.float32)
    ref2_i = jax.random.normal(kb[3], (1, batch2), jnp.float32)

    p2_r, p2_i = faithful_transform_pallas(
        ref_coef, trans_amp, trans_coef, [ref2_r, ref2_i], [sita2_r, sita2_i])
    jax.block_until_ready((p2_r, p2_i))
    e2_r = faithful_transform_ref(ref_coef, trans_amp, trans_coef, ref2_r, sita2_r)
    e2_i = faithful_transform_ref(ref_coef, trans_amp, trans_coef, ref2_i, sita2_i)
    assert jnp.allclose(p2_r, e2_r, rtol=1e-4, atol=1e-4)
    assert jnp.allclose(p2_i, e2_i, rtol=1e-4, atol=1e-4)

    # ---- bf16 I/O path (halves HBM bytes; f32 accumulate in-kernel) -------
    p3_r, p3_i = faithful_transform_pallas(
        ref_coef, trans_amp, trans_coef,
        [ref2_r.astype(jnp.bfloat16), ref2_i.astype(jnp.bfloat16)],
        [sita2_r.astype(jnp.bfloat16), sita2_i.astype(jnp.bfloat16)])
    jax.block_until_ready((p3_r, p3_i))
    assert jnp.allclose(p3_r.astype(jnp.float32), e2_r, rtol=5e-2, atol=5e-2)
    assert jnp.allclose(p3_i.astype(jnp.float32), e2_i, rtol=5e-2, atol=5e-2)

    # TODO(synk): forward()/_postprocess() are `pass` in the source module and
    # amp_net/phase_net are None, so only linear_transform + faithful_transform
    # (the module's actual compute) are implemented as the Pallas path.
    print("KERNEL_OK")
</pallas_src>

<mosaic_0001>
module attributes {stable_mosaic.version = 11 : i64} {
  func.func @kernel(%arg0: i32, %arg1: memref<4x4xf32, #tpu.memory_space<vmem>>, %arg2: memref<1x8xf32, #tpu.memory_space<vmem>>, %arg3: memref<3x8xf32, #tpu.memory_space<vmem>>, %arg4: memref<1x8xf32, #tpu.memory_space<vmem>>, %arg5: memref<3x8xf32, #tpu.memory_space<vmem>>, %arg6: memref<4x8xf32, #tpu.memory_space<vmem>>, %arg7: memref<4x8xf32, #tpu.memory_space<vmem>>) attributes {dimension_semantics = [#tpu.dimension_semantics<parallel>], iteration_bounds = array<i64: 1>, scalar_prefetch = 0 : i64, scratch_operands = 0 : i64, tpu.core_type = #tpu.core_type<tc>, window_params = [{pipeline_mode = #tpu.pipeline_mode<synchronous>, transform_indices = @transform_0, window_bounds = array<i64: 4, 4>}, {transform_indices = @transform_1, window_bounds = array<i64: 1, 8>}, {transform_indices = @transform_2, window_bounds = array<i64: 3, 8>}, {transform_indices = @transform_3, window_bounds = array<i64: 1, 8>}, {transform_indices = @transform_4, window_bounds = array<i64: 3, 8>}, {transform_indices = @transform_5, window_bounds = array<i64: 4, 8>}, {transform_indices = @transform_6, window_bounds = array<i64: 4, 8>}]} {
    %c0 = arith.constant 0 : index
    %c0_0 = arith.constant 0 : index
    %0 = vector.load %arg1[%c0, %c0_0] : memref<4x4xf32, #tpu.memory_space<vmem>>, vector<4x4xf32>
    %1 = vector.extract_strided_slice %0 {offsets = [0, 0], sizes = [4, 1], strides = [1, 1]} : vector<4x4xf32> to vector<4x1xf32>
    %c0_1 = arith.constant 0 : index
    %c0_2 = arith.constant 0 : index
    %2 = vector.load %arg2[%c0_1, %c0_2] : memref<1x8xf32, #tpu.memory_space<vmem>>, vector<1x8xf32>
    %3 = vector.broadcast %1 : vector<4x1xf32> to vector<4x8xf32>
    %4 = vector.broadcast %2 : vector<1x8xf32> to vector<4x8xf32>
    %5 = arith.mulf %3, %4 : vector<4x8xf32>
    %6 = vector.extract_strided_slice %0 {offsets = [0, 1], sizes = [4, 1], strides = [1, 1]} : vector<4x4xf32> to vector<4x1xf32>
    %c0_3 = arith.constant 0 : index
    %c0_4 = arith.constant 0 : index
    %7 = vector.load %arg3[%c0_3, %c0_4] : memref<3x8xf32, #tpu.memory_space<vmem>>, vector<1x8xf32>
    %8 = vector.broadcast %6 : vector<4x1xf32> to vector<4x8xf32>
    %9 = vector.broadcast %7 : vector<1x8xf32> to vector<4x8xf32>
    %10 = arith.mulf %8, %9 : vector<4x8xf32>
    %11 = arith.addf %5, %10 : vector<4x8xf32>
    %12 = vector.extract_strided_slice %0 {offsets = [0, 2], sizes = [4, 1], strides = [1, 1]} : vector<4x4xf32> to vector<4x1xf32>
    %c1 = arith.constant 1 : index
    %c0_5 = arith.constant 0 : index
    %13 = vector.load %arg3[%c1, %c0_5] : memref<3x8xf32, #tpu.memory_space<vmem>>, vector<1x8xf32>
    %14 = vector.broadcast %12 : vector<4x1xf32> to vector<4x8xf32>
    %15 = vector.broadcast %13 : vector<1x8xf32> to vector<4x8xf32>
    %16 = arith.mulf %14, %15 : vector<4x8xf32>
    %17 = arith.addf %11, %16 : vector<4x8xf32>
    %18 = vector.extract_strided_slice %0 {offsets = [0, 3], sizes = [4, 1], strides = [1, 1]} : vector<4x4xf32> to vector<4x1xf32>
    %c2 = arith.constant 2 : index
    %c0_6 = arith.constant 0 : index
    %19 = vector.load %arg3[%c2, %c0_6] : memref<3x8xf32, #tpu.memory_space<vmem>>, vector<1x8xf32>
    %20 = vector.broadcast %18 : vector<4x1xf32> to vector<4x8xf32>
    %21 = vector.broadcast %19 : vector<1x8xf32> to vector<4x8xf32>
    %22 = arith.mulf %20, %21 : vector<4x8xf32>
    %23 = arith.addf %17, %22 : vector<4x8xf32>
    %c0_7 = arith.constant 0 : index
    %c0_8 = arith.constant 0 : index
    %24 = vector.load %arg6[%c0_7, %c0_8] : memref<4x8xf32, #tpu.memory_space<vmem>>, vector<4x8xf32>
    tpu.vector_store %arg6[%c0_7, %c0_8], %23 {strides = array<i32>} : memref<4x8xf32, #tpu.memory_space<vmem>>, vector<4x8xf32>,
    %25 = vector.extract_strided_slice %0 {offsets = [0, 0], sizes = [4, 1], strides = [1, 1]} : vector<4x4xf32> to vector<4x1xf32>
    %c0_9 = arith.constant 0 : index
    %c0_10 = arith.constant 0 : index
    %26 = vector.load %arg4[%c0_9, %c0_10] : memref<1x8xf32, #tpu.memory_space<vmem>>, vector<1x8xf32>
    %27 = vector.broadcast %25 : vector<4x1xf32> to vector<4x8xf32>
    %28 = vector.broadcast %26 : vector<1x8xf32> to vector<4x8xf32>
    %29 = arith.mulf %27, %28 : vector<4x8xf32>
    %30 = vector.extract_strided_slice %0 {offsets = [0, 1], sizes = [4, 1], strides = [1, 1]} : vector<4x4xf32> to vector<4x1xf32>
    %c0_11 = arith.constant 0 : index
    %c0_12 = arith.constant 0 : index
    %31 = vector.load %arg5[%c0_11, %c0_12] : memref<3x8xf32, #tpu.memory_space<vmem>>, vector<1x8xf32>
    %32 = vector.broadcast %30 : vector<4x1xf32> to vector<4x8xf32>
    %33 = vector.broadcast %31 : vector<1x8xf32> to vector<4x8xf32>
    %34 = arith.mulf %32, %33 : vector<4x8xf32>
    %35 = arith.addf %29, %34 : vector<4x8xf32>
    %36 = vector.extract_strided_slice %0 {offsets = [0, 2], sizes = [4, 1], strides = [1, 1]} : vector<4x4xf32> to vector<4x1xf32>
    %c1_13 = arith.constant 1 : index
    %c0_14 = arith.constant 0 : index
    %37 = vector.load %arg5[%c1_13, %c0_14] : memref<3x8xf32, #tpu.memory_space<vmem>>, vector<1x8xf32>
    %38 = vector.broadcast %36 : vector<4x1xf32> to vector<4x8xf32>
    %39 = vector.broadcast %37 : vector<1x8xf32> to vector<4x8xf32>
    %40 = arith.mulf %38, %39 : vector<4x8xf32>
    %41 = arith.addf %35, %40 : vector<4x8xf32>
    %42 = vector.extract_strided_slice %0 {offsets = [0, 3], sizes = [4, 1], strides = [1, 1]} : vector<4x4xf32> to vector<4x1xf32>
    %c2_15 = arith.constant 2 : index
    %c0_16 = arith.constant 0 : index
    %43 = vector.load %arg5[%c2_15, %c0_16] : memref<3x8xf32, #tpu.memory_space<vmem>>, vector<1x8xf32>
    %44 = vector.broadcast %42 : vector<4x1xf32> to vector<4x8xf32>
    %45 = vector.broadcast %43 : vector<1x8xf32> to vector<4x8xf32>
    %46 = arith.mulf %44, %45 : vector<4x8xf32>
    %47 = arith.addf %41, %46 : vector<4x8xf32>
    %c0_17 = arith.constant 0 : index
    %c0_18 = arith.constant 0 : index
    %48 = vector.load %arg7[%c0_17, %c0_18] : memref<4x8xf32, #tpu.memory_space<vmem>>, vector<4x8xf32>
    tpu.vector_store %arg7[%c0_17, %c0_18], %47 {strides = array<i32>} : memref<4x8xf32, #tpu.memory_space<vmem>>, vector<4x8xf32>,
    return
  }
  func.func @transform_0(%arg0: i32) -> (i32, i32) {
    %c0_i32 = arith.constant 0 : i32
    %c0_i32_0 = arith.constant 0 : i32
    %c0_i32_1 = arith.constant 0 : i32
    return %c0_i32, %c0_i32_0 : i32, i32
  }
  func.func @transform_1(%arg0: i32) -> (i32, i32) {
    %c0_i32 = arith.constant 0 : i32
    %c0_i32_0 = arith.constant 0 : i32
    return %c0_i32, %arg0 : i32, i32
  }
  func.func @transform_2(%arg0: i32) -> (i32, i32) {
    %c0_i32 = arith.constant 0 : i32
    %c0_i32_0 = arith.constant 0 : i32
    return %c0_i32, %arg0 : i32, i32
  }
  func.func @transform_3(%arg0: i32) -> (i32, i32) {
    %c0_i32 = arith.constant 0 : i32
    %c0_i32_0 = arith.constant 0 : i32
    return %c0_i32, %arg0 : i32, i32
  }
  func.func @transform_4(%arg0: i32) -> (i32, i32) {
    %c0_i32 = arith.constant 0 : i32
    %c0_i32_0 = arith.constant 0 : i32
    return %c0_i32, %arg0 : i32, i32
  }
  func.func @transform_5(%arg0: i32) -> (i32, i32) {
    %c0_i32 = arith.constant 0 : i32
    %c0_i32_0 = arith.constant 0 : i32
    return %c0_i32, %arg0 : i32, i32
  }
  func.func @transform_6(%arg0: i32) -> (i32, i32) {
    %c0_i32 = arith.constant 0 : i32
    %c0_i32_0 = arith.constant 0 : i32
    return %c0_i32, %arg0 : i32, i32
  }
}

</mosaic_0001>

<llo_original>
// kernel: tpu_custom_call.1
$region0: #{tpu_custom_call.1}
  #allocation0 [shape = 'u32[]', space=smem, size = 0x4, offset = 0x4, fixed_abs, tag = 'smem constant byte address 0x4 - core index']
  #allocation1 [shape = 'u32[144,128]{1,0:T(1,128)}', space=vmem, size = 0x12000, scoped, tag = 'internal scratch']
  %s0 = inlined_call_operand.hbm [shape: f32[4,4], index: 0, kind: input, shape index: {}]
  %s1 = inlined_call_operand.vmem [shape: f32[1,8], index: 1, kind: input, shape index: {}]
  %s2 = inlined_call_operand.vmem [shape: f32[3,8], index: 2, kind: input, shape index: {}]
  %s3 = inlined_call_operand.vmem [shape: f32[1,8], index: 3, kind: input, shape index: {}]
  %s4 = inlined_call_operand.vmem [shape: f32[3,8], index: 4, kind: input, shape index: {}]
  %s5 = inlined_call_operand.hbm [shape: f32[4,8], index: 5, kind: output, shape index: {0}]
  %s6 = inlined_call_operand.hbm [shape: f32[4,8], index: 6, kind: output, shape index: {1}]
  %7 = xla_tuple %s5, %s6
  %s8 = sld [smem:[#allocation0]]
  $region42: #{tpu_custom_call.1} parent=0
    _
  %s10 = ssub.s32 1, %s8
  %s11 = scalar_select 0, %s10, %s8
  $region1: #{tpu_custom_call.1} parent=0
    #allocation2 [shape = 'u8[2048]{0}', space=vmem, size = 0x800, scoped, tag = 'input window, operand 0, single buffered']
    #allocation3 [shape = 's32[1]{0}', space=sflag, size = 0x4, scoped, tag = 'scoped memory for tpu_custom_call.1']
    #allocation4 [shape = 's32[1]{0}', space=sflag, size = 0x4, scoped, tag = 'scoped memory for tpu_custom_call.1']
    #allocation5 [shape = 'u8[2048]{0}', space=vmem, size = 0x800, scoped, tag = 'output window, operand 0, single buffered']
    #allocation6 [shape = 'u8[2048]{0}', space=vmem, size = 0x800, scoped, tag = 'output window, operand 1, single buffered']
    #allocation7 [shape = 's32[1]{0}', space=sflag, size = 0x4, scoped, tag = 'scoped memory for tpu_custom_call.1']
    %12 = vsyncpa [#allocation3], 0
    %13 = vsyncpa [#allocation4], 0
    %14 = vsyncpa [#allocation7], 0
    // Predicated region
    $region2: #{tpu_custom_call.1} parent=1 // pred_check
      _
    $region3: #{tpu_custom_call.1} parent=1 // pred_check_branch
      %16 = sbr.rel (0) target = $region5
    $region4: #{tpu_custom_call.1} parent=1 // pred_region
      %s18 = ssub.s32 64, 64
      %19 = vsyncadd [#allocation3], %s18
      %s21 = sshll.u32 [#allocation2], 4
      %s22 = int_to_ptr.vmem [resolvable:$true] %s21
      %24 = dma.hbm_to_vmem [thread:$0]  %s0, 64, %s22, [#allocation3]
    $region5: #{tpu_custom_call.1} parent=1 // pred_fallthru
      _
    // Predicated region
    $region6: #{tpu_custom_call.1} parent=1 // pred_check
      _
    $region7: #{tpu_custom_call.1} parent=1 // pred_check_branch
      %26 = sbr.rel (0) target = $region9
    $region8: #{tpu_custom_call.1} parent=1 // pred_region
      _
    $region9: #{tpu_custom_call.1} parent=1 // pred_fallthru
      _
    // Predicated region
    $region10: #{tpu_custom_call.1} parent=1 // pred_check
      _
    $region11: #{tpu_custom_call.1} parent=1 // pred_check_branch
      %28 = sbr.rel (0) target = $region13
    $region12: #{tpu_custom_call.1} parent=1 // pred_region
      _
    $region13: #{tpu_custom_call.1} parent=1 // pred_fallthru
      _
    // Predicated region
    $region14: #{tpu_custom_call.1} parent=1 // pred_check
      _
    $region15: #{tpu_custom_call.1} parent=1 // pred_check_branch
      %30 = sbr.rel (0) target = $region17
    $region16: #{tpu_custom_call.1} parent=1 // pred_region
      _
    $region17: #{tpu_custom_call.1} parent=1 // pred_fallthru
      _
    // Predicated region
    $region18: #{tpu_custom_call.1} parent=1 // pred_check
      _
    $region19: #{tpu_custom_call.1} parent=1 // pred_check_branch
      %32 = sbr.rel (0) target = $region21
    $region20: #{tpu_custom_call.1} parent=1 // pred_region
      _
    $region21: #{tpu_custom_call.1} parent=1 // pred_fallthru
      _
    // Predicated region
    $region22: #{tpu_custom_call.1} parent=1 // pred_check
      _
    $region23: #{tpu_custom_call.1} parent=1 // pred_check_branch
      %34 = sbr.rel (0) target = $region25
    $region24: #{tpu_custom_call.1} parent=1 // pred_region
      %35 = dma.done [#allocation3], 64
    $region25: #{tpu_custom_call.1} parent=1 // pred_fallthru
      _
    %v36 = vld [vmem:[#allocation2] sm:$0xf]
    %v37 = vld [vmem:[%s1] sm:$0x1]
    %39 = vset.pattern.permute.xlu0 0
    %40 = vperm.xlu0 %39, %v36
    %v41 = vpop.permute.xlu0 %40
    %v44 = vlaneseq
    %v45 = vshrl.u32 %v44, 7
    %v46 = vsub.s32 0, %v45
    %v47 = vrot.slane %v37, %v46
    %v49 = vmul.f32 %v41, %v47
    %v50 = vld [vmem:[%s2] sm:$0x1]
    %51 = vset.pattern.permute.xlu0 1
    %52 = vperm.xlu0 %51, %v36
    %v53 = vpop.permute.xlu0 %52
    %v55 = vlaneseq
    %v56 = vshrl.u32 %v55, 7
    %v57 = vsub.s32 0, %v56
    %v58 = vrot.slane %v50, %v57
    %v59 = vmul.f32 %v53, %v58
    %v60 = vadd.f32 %v49, %v59
    %v61 = vld [vmem:[%s2 + $0x1] sm:$0x1]
    %62 = vset.pattern.permute.xlu0 2
    %63 = vperm.xlu0 %62, %v36
    %v64 = vpop.permute.xlu0 %63
    %v66 = vlaneseq
    %v67 = vshrl.u32 %v66, 7
    %v68 = vsub.s32 0, %v67
    %v69 = vrot.slane %v61, %v68
    %v70 = vmul.f32 %v64, %v69
    %v71 = vadd.f32 %v60, %v70
    %v72 = vld [vmem:[%s2 + $0x2] sm:$0x1]
    %73 = vset.pattern.permute.xlu0 3
    %74 = vperm.xlu0 %73, %v36
    %v75 = vpop.permute.xlu0 %74
    %v77 = vlaneseq
    %v78 = vshrl.u32 %v77, 7
    %v79 = vsub.s32 0, %v78
    %v80 = vrot.slane %v72, %v79
    %v81 = vmul.f32 %v75, %v80
    %v82 = vadd.f32 %v71, %v81
    %vm83 = vcmask 60416
    %84 = vst.msk [vmem:[#allocation5] sm:$0xf] %vm83, %v82
    %v85 = vld [vmem:[%s3] sm:$0x1]
    %v87 = vlaneseq
    %v88 = vshrl.u32 %v87, 7
    %v89 = vsub.s32 0, %v88
    %v90 = vrot.slane %v85, %v89
    %v92 = vmul.f32 %v41, %v90
    %v93 = vld [vmem:[%s4] sm:$0x1]
    %v94 = vlaneseq
    %v95 = vshrl.u32 %v94, 7
    %v96 = vsub.s32 0, %v95
    %v97 = vrot.slane %v93, %v96
    %v98 = vmul.f32 %v53, %v97
    %v99 = vadd.f32 %v92, %v98
    %v100 = vld [vmem:[%s4 + $0x1] sm:$0x1]
    %v101 = vlaneseq
    %v102 = vshrl.u32 %v101, 7
    %v103 = vsub.s32 0, %v102
    %v104 = vrot.slane %v100, %v103
    %v105 = vmul.f32 %v64, %v104
    %v106 = vadd.f32 %v99, %v105
    %v107 = vld [vmem:[%s4 + $0x2] sm:$0x1]
    %v108 = vlaneseq
    %v109 = vshrl.u32 %v108, 7
    %v110 = vsub.s32 0, %v109
    %v111 = vrot.slane %v107, %v110
    %v112 = vmul.f32 %v75, %v111
    %v113 = vadd.f32 %v106, %v112
    %114 = vst.msk [vmem:[#allocation6] sm:$0xf] %vm83, %v113
    // Predicated region
    $region26: #{tpu_custom_call.1} parent=1 // pred_check
      _
    $region27: #{tpu_custom_call.1} parent=1 // pred_check_branch
      %116 = sbr.rel (0) target = $region29
    $region28: #{tpu_custom_call.1} parent=1 // pred_region
      %s118 = ssub.s32 64, 64
      %119 = vsyncadd [#allocation4], %s118
      %s121 = sshll.u32 [#allocation5], 4
      %s122 = int_to_ptr.vmem [resolvable:$true] %s121
      %124 = dma.vmem_to_hbm [thread:$0]  %s122, 64, %s5, [#allocation4]
    $region29: #{tpu_custom_call.1} parent=1 // pred_fallthru
      _
    // Predicated region
    $region30: #{tpu_custom_call.1} parent=1 // pred_check
      _
    $region31: #{tpu_custom_call.1} parent=1 // pred_check_branch
      %126 = sbr.rel (0) target = $region33
    $region32: #{tpu_custom_call.1} parent=1 // pred_region
      %s128 = ssub.s32 64, 64
      %129 = vsyncadd [#allocation7], %s128
      %s131 = sshll.u32 [#allocation6], 4
      %s132 = int_to_ptr.vmem [resolvable:$true] %s131
      %134 = dma.vmem_to_hbm [thread:$0]  %s132, 64, %s6, [#allocation7]
    $region33: #{tpu_custom_call.1} parent=1 // pred_fallthru
      _
    // Predicated region
    $region34: #{tpu_custom_call.1} parent=1 // pred_check
      _
    $region35: #{tpu_custom_call.1} parent=1 // pred_check_branch
      %136 = sbr.rel (0) target = $region37
    $region36: #{tpu_custom_call.1} parent=1 // pred_region
      %137 = dma.done [#allocation4], 64
    $region37: #{tpu_custom_call.1} parent=1 // pred_fallthru
      _
    // Predicated region
    $region38: #{tpu_custom_call.1} parent=1 // pred_check
      _
    $region39: #{tpu_custom_call.1} parent=1 // pred_check_branch
      %139 = sbr.rel (0) target = $region41
    $region40: #{tpu_custom_call.1} parent=1 // pred_region
      %140 = dma.done [#allocation7], 64
    $region41: #{tpu_custom_call.1} parent=1 // pred_fallthru
      _
    %141 = vsyncpa [#allocation3], 1
    %142 = vsyncpa [#allocation4], 1
    %143 = vsyncpa [#allocation7], 1

</llo_original>
